<compile_context>
chip_gen: v5e
topology: v5e:2x2
jax: 0.10.0
libtpu: 0.0.40
codegen_flags: <defaults>
</compile_context>

<pallas_src>
import functools
import math

import numpy as np
import jax
import jax.numpy as jnp
from jax.experimental import pallas as pl
from jax.experimental.pallas import tpu as pltpu


# ----------------------------- host-side parameter construction -------------

def _round_up(n, m):
    return ((n + m - 1) // m) * m


def _optimal_dft_size(n):
    """cv2.getOptimalDFTSize: smallest m >= n with only factors 2, 3, 5."""
    m = n
    while True:
        k = m
        for p in (2, 3, 5):
            while k % p == 0:
                k //= p
        if k == 1:
            return m
        m += 1


def _reflect101(idx, n):
    """BORDER_REFLECT_101 index mapping (gfedcb|abcdefgh|gfedcba)."""
    if idx < 0:
        return -idx
    if idx >= n:
        return 2 * n - 2 - idx
    return idx


def _sobel_operators(H, W):
    """Band matrices: sobelx = rvs @ X @ rhd, sobely = rvd @ X @ rhs
    (separable 5x5 OpenCV Sobel with reflect-101 border folded in)."""
    smooth = np.array([1., 4., 6., 4., 1.], dtype=np.float64)
    deriv = np.array([-1., -2., 0., 2., 1.], dtype=np.float64)

    def vert(k, n):
        A = np.zeros((n, n + 4), dtype=np.float64)
        for y in range(n):
            for i in range(5):
                A[y, y + i] = k[i]
        P = np.zeros((n + 4, n), dtype=np.float64)
        for r in range(n + 4):
            P[r, _reflect101(r - 2, n)] = 1.0
        return (A @ P).astype(np.float32)              # (n, n)

    def horiz(k, n):
        A = np.zeros((n + 4, n), dtype=np.float64)
        for x in range(n):
            for j in range(5):
                A[x + j, x] = k[j]
        P = np.zeros((n + 4, n), dtype=np.float64)
        for c in range(n + 4):
            P[c, _reflect101(c - 2, n)] = 1.0
        return (P.T @ A).astype(np.float32)            # (n, n)

    return vert(smooth, H), vert(deriv, H), horiz(deriv, W), horiz(smooth, W)


def _embed(a, rows, cols):
    """Zero-embed `a` in the top-left of a (rows, cols) matrix (norm-preserving)."""
    out = np.zeros((rows, cols), np.float32)
    out[:a.shape[0], :a.shape[1]] = a
    return out


# ----------------------------------------------- the Pallas TPU kernel ------

def _blursim_kernel(img1_ref, img2_ref, rv2_ref, rhd_ref, rhs_ref, out_ref,
                    xpad_ref, *, alpha, inv_sobel, inv_dft, H, W, Hp, Wp):
    f32 = jnp.float32
    bf16 = jnp.bfloat16

    x1 = img1_ref[...]                                  # (H, W) f32
    x2 = img2_ref[...]

    # ---- spectral term via Parseval (exact, f32): ||F(pad(d))|| = sqrt(HdWd)*||d||
    d = x1 - x2
    d_sq = jnp.sum(d * d, keepdims=True)                # (1, 1)

    # ---- in-kernel zero-pad + lane-concat [x1 | x2] onto a (Hp, 2Wp) canvas ----
    xpad_ref[...] = jnp.zeros_like(xpad_ref)
    xpad_ref[0:H, 0:W] = x1
    xpad_ref[0:H, Wp:Wp + W] = x2
    x12 = xpad_ref[...].astype(bf16)                    # (Hp, 2Wp)

    # ---- Sobel magnitude, both images batched: 3 bf16 MXU matmuls, f32 acc ----
    # vertical stage: [rvs ; rvd] @ [x1 | x2]
    t = jnp.dot(rv2_ref[...], x12, preferred_element_type=f32)   # (2Hp, 2Wp)
    t = t.astype(bf16)
    # restack lane halves along sublanes (tile-aligned copy), horizontal stage
    tx = jnp.concatenate([t[:Hp, :Wp], t[:Hp, Wp:]], axis=0)     # [rvs@x1 ; rvs@x2]
    ty = jnp.concatenate([t[Hp:, :Wp], t[Hp:, Wp:]], axis=0)     # [rvd@x1 ; rvd@x2]
    sx = jnp.dot(tx, rhd_ref[...], preferred_element_type=f32)   # [sx1 ; sx2]
    sy = jnp.dot(ty, rhs_ref[...], preferred_element_type=f32)   # [sy1 ; sy2]

    mag = jnp.sqrt(sx * sx + sy * sy)                   # (2Hp, Wp) = [mag1 ; mag2]
    sdiff = mag[:Hp, :] - mag[Hp:, :]
    s_sq = jnp.sum(sdiff * sdiff, keepdims=True)        # (1, 1)

    # fftshift / abs / per-element 1/div all folded into the final scalars.
    loss = ((1.0 - alpha) * inv_dft) * jnp.sqrt(d_sq) \
         + (alpha * inv_sobel) * jnp.sqrt(s_sq)
    out_ref[...] = loss.astype(out_ref.dtype)


# ------------------------------------------------------------ wrapper -------

@functools.lru_cache(maxsize=None)
def _make_blursim_fn(H, W, alpha):
    Hd, Wd = _optimal_dft_size(H), _optimal_dft_size(W)
    Hp, Wp = _round_up(H, 8), _round_up(W, 128)

    rvs, rvd, rhd, rhs = _sobel_operators(H, W)
    # stacked vertical operator [rvs ; rvd]  (2Hp, Hp); plain horizontal ops (Wp, Wp)
    rv2_np = np.concatenate([_embed(rvs, Hp, Hp), _embed(rvd, Hp, Hp)], axis=0)
    rhd_np = _embed(rhd, Wp, Wp)
    rhs_np = _embed(rhs, Wp, Wp)
    # operator entries are exact small integers -> lossless in bf16
    rv2_op = jnp.asarray(rv2_np, jnp.bfloat16)
    rhd_op = jnp.asarray(rhd_np, jnp.bfloat16)
    rhs_op = jnp.asarray(rhs_np, jnp.bfloat16)

    kernel = functools.partial(
        _blursim_kernel,
        alpha=float(alpha),
        inv_sobel=1.0 / float(H * W),
        inv_dft=1.0 / math.sqrt(float(Hd * Wd)),   # Parseval factor folded in
        H=H, W=W, Hp=Hp, Wp=Wp)

    # cost estimate (3 matmuls + sqrt of the magnitude field)
    flops = 2 * (2 * Hp) * Hp * (2 * Wp) + 2 * (2 * (2 * Hp) * Wp * Wp)
    bytes_accessed = 2 * H * W * 4 + (2 * Hp * Hp + 2 * Wp * Wp) * 2 + 4
    cost = pl.CostEstimate(flops=int(flops),
                           transcendentals=int(2 * Hp * Wp + 2),
                           bytes_accessed=int(bytes_accessed))

    # actual resident footprint (inputs + scratch + intermediates), with headroom
    footprint = (2 * H * W * 4                      # images (f32)
                 + (2 * Hp * Hp + 2 * Wp * Wp) * 2  # bf16 operators
                 + Hp * 2 * Wp * 4                  # pad scratch
                 + 6 * (2 * Hp) * (2 * Wp) * 4)     # intermediates
    vmem_limit = int(max(4 * 1024 * 1024, 4 * footprint))

    call = pl.pallas_call(
        kernel,
        out_shape=jax.ShapeDtypeStruct((1, 1), jnp.float32),
        in_specs=[pl.BlockSpec(memory_space=pltpu.MemorySpace.VMEM)] * 5,
        out_specs=pl.BlockSpec(memory_space=pltpu.MemorySpace.VMEM),
        scratch_shapes=[pltpu.VMEM((Hp, 2 * Wp), jnp.float32)],
        compiler_params=pltpu.CompilerParams(vmem_limit_bytes=vmem_limit),
        cost_estimate=cost,
    )

    @jax.jit
    def run(img1, img2):
        # raw, un-padded images; all padding / concatenation happens in-kernel
        return call(img1.astype(jnp.float32), img2.astype(jnp.float32),
                    rv2_op, rhd_op, rhs_op)[0, 0]

    return run


def blursim_loss(img1, img2, alpha=0.9):
    img1 = jnp.asarray(img1, jnp.float32)
    img2 = jnp.asarray(img2, jnp.float32)
    H, W = img1.shape
    return _make_blursim_fn(int(H), int(W), float(alpha))(img1, img2)


# ------------------------------------------------ numpy reference (check) ---

def _reference(img1, img2, alpha):
    img1 = np.asarray(img1, np.float64)
    img2 = np.asarray(img2, np.float64)
    H, W = img1.shape
    Hd, Wd = _optimal_dft_size(H), _optimal_dft_size(W)
    smooth = np.array([1., 4., 6., 4., 1.])
    deriv = np.array([-1., -2., 0., 2., 1.])

    def sobel_mag(x):
        p = np.pad(x, 2, mode="reflect")  # == BORDER_REFLECT_101
        sx = np.zeros((H, W))
        sy = np.zeros((H, W))
        for i in range(5):
            for j in range(5):
                blk = p[i:i + H, j:j + W]
                sx += smooth[i] * deriv[j] * blk
                sy += deriv[i] * smooth[j] * blk
        return np.sqrt(sx * sx + sy * sy)

    def dft(x):
        pad = np.zeros((Hd, Wd))
        pad[:H, :W] = x
        return np.fft.fft2(pad)

    sobel_term = np.linalg.norm(np.abs(sobel_mag(img1) - sobel_mag(img2)) / (H * W))
    dft_term = np.linalg.norm(np.abs(dft(img1) - dft(img2)) / (Hd * Wd))
    return (1.0 - alpha) * dft_term + alpha * sobel_term


# ------------------------------------------------------------------ main ----

if __name__ == "__main__":
    key = jax.random.PRNGKey(0)
    k1, k2 = jax.random.split(key)
    H, W = 64, 48            # grayscale image pair
    img1 = jax.random.uniform(k1, (H, W), dtype=jnp.float32)
    img2 = jax.random.uniform(k2, (H, W), dtype=jnp.float32)

    loss = blursim_loss(img1, img2, alpha=0.9)
    loss = jax.block_until_ready(loss)

    ref = _reference(np.asarray(img1), np.asarray(img2), alpha=0.9)
    assert np.isfinite(float(loss))
    np.testing.assert_allclose(float(loss), ref, rtol=1e-2, atol=1e-4)

    print("KERNEL_OK")
</pallas_src>

<mosaic_0001>
module attributes {stable_mosaic.version = 11 : i64} {
  func.func @_blursim_kernel(%arg0: memref<64x48xf32, #tpu.memory_space<vmem>>, %arg1: memref<64x48xf32, #tpu.memory_space<vmem>>, %arg2: memref<128x64xbf16, #tpu.memory_space<vmem>>, %arg3: memref<128x128xbf16, #tpu.memory_space<vmem>>, %arg4: memref<128x128xbf16, #tpu.memory_space<vmem>>, %arg5: memref<1x1xf32, #tpu.memory_space<vmem>>, %arg6: memref<64x256xf32, #tpu.memory_space<vmem>>) attributes {dimension_semantics = [], scalar_prefetch = 0 : i64, scratch_operands = 1 : i64, tpu.core_type = #tpu.core_type<tc>} {
    %c0 = arith.constant 0 : index
    %c0_0 = arith.constant 0 : index
    %0 = vector.load %arg0[%c0, %c0_0] : memref<64x48xf32, #tpu.memory_space<vmem>>, vector<64x48xf32>
    %c0_1 = arith.constant 0 : index
    %c0_2 = arith.constant 0 : index
    %1 = vector.load %arg1[%c0_1, %c0_2] : memref<64x48xf32, #tpu.memory_space<vmem>>, vector<64x48xf32>
    %2 = arith.subf %0, %1 : vector<64x48xf32>
    %3 = arith.mulf %2, %2 : vector<64x48xf32>
    %4 = vector.shape_cast %3 : vector<64x48xf32> to vector<1x64x48xf32>
    %cst = arith.constant dense<0.000000e+00> : vector<1xf32>
    %5 = vector.multi_reduction <add>, %4, %cst [1, 2] : vector<1x64x48xf32> to vector<1xf32>
    %6 = vector.shape_cast %5 : vector<1xf32> to vector<1x1x1xf32>
    %7 = vector.extract %6[0, 0, 0] : f32 from vector<1x1x1xf32>
    %8 = vector.broadcast %7 : f32 to vector<1x1xf32>
    %cst_3 = arith.constant 0.000000e+00 : f32
    %9 = vector.broadcast %cst_3 : f32 to vector<64x256xf32>
    %c0_4 = arith.constant 0 : index
    %c0_5 = arith.constant 0 : index
    %10 = vector.load %arg6[%c0_4, %c0_5] : memref<64x256xf32, #tpu.memory_space<vmem>>, vector<64x256xf32>
    tpu.vector_store %arg6[%c0_4, %c0_5], %9 {strides = array<i32>} : memref<64x256xf32, #tpu.memory_space<vmem>>, vector<64x256xf32>,
    %c0_6 = arith.constant 0 : index
    %c0_7 = arith.constant 0 : index
    %11 = vector.load %arg6[%c0_6, %c0_7] : memref<64x256xf32, #tpu.memory_space<vmem>>, vector<64x48xf32>
    tpu.vector_store %arg6[%c0_6, %c0_7], %0 {strides = array<i32>} : memref<64x256xf32, #tpu.memory_space<vmem>>, vector<64x48xf32>,
    %c0_8 = arith.constant 0 : index
    %c128 = arith.constant 128 : index
    %12 = vector.load %arg6[%c0_8, %c128] : memref<64x256xf32, #tpu.memory_space<vmem>>, vector<64x48xf32>
    tpu.vector_store %arg6[%c0_8, %c128], %1 {strides = array<i32>} : memref<64x256xf32, #tpu.memory_space<vmem>>, vector<64x48xf32>,
    %c0_9 = arith.constant 0 : index
    %c0_10 = arith.constant 0 : index
    %13 = vector.load %arg6[%c0_9, %c0_10] : memref<64x256xf32, #tpu.memory_space<vmem>>, vector<64x256xf32>
    %14 = arith.truncf %13 : vector<64x256xf32> to vector<64x256xbf16>
    %c0_11 = arith.constant 0 : index
    %c0_12 = arith.constant 0 : index
    %15 = vector.load %arg2[%c0_11, %c0_12] : memref<128x64xbf16, #tpu.memory_space<vmem>>, vector<128x64xbf16>
    %cst_13 = arith.constant dense<0.000000e+00> : vector<128x256xf32>
    %16 = tpu.matmul %15, %14, %cst_13 {dimension_numbers = #tpu.dot_dimension_numbers<[1], [0], [0], [1], [0, 0, 1, 1], [], []>} : vector<128x64xbf16>, vector<64x256xbf16>, vector<128x256xf32> -> vector<128x256xf32>
    %17 = arith.truncf %16 : vector<128x256xf32> to vector<128x256xbf16>
    %18 = vector.extract_strided_slice %17 {offsets = [0, 0], sizes = [64, 128], strides = [1, 1]} : vector<128x256xbf16> to vector<64x128xbf16>
    %19 = vector.extract_strided_slice %17 {offsets = [0, 128], sizes = [64, 128], strides = [1, 1]} : vector<128x256xbf16> to vector<64x128xbf16>
    %20 = tpu.concatenate %18, %19 in 0 : vector<64x128xbf16>, vector<64x128xbf16> -> vector<128x128xbf16>
    %21 = vector.extract_strided_slice %17 {offsets = [64, 0], sizes = [64, 128], strides = [1, 1]} : vector<128x256xbf16> to vector<64x128xbf16>
    %22 = vector.extract_strided_slice %17 {offsets = [64, 128], sizes = [64, 128], strides = [1, 1]} : vector<128x256xbf16> to vector<64x128xbf16>
    %23 = tpu.concatenate %21, %22 in 0 : vector<64x128xbf16>, vector<64x128xbf16> -> vector<128x128xbf16>
    %c0_14 = arith.constant 0 : index
    %c0_15 = arith.constant 0 : index
    %24 = vector.load %arg3[%c0_14, %c0_15] : memref<128x128xbf16, #tpu.memory_space<vmem>>, vector<128x128xbf16>
    %cst_16 = arith.constant dense<0.000000e+00> : vector<128x128xf32>
    %25 = tpu.matmul %20, %24, %cst_16 {dimension_numbers = #tpu.dot_dimension_numbers<[1], [0], [0], [1], [0, 0, 1, 1], [], []>} : vector<128x128xbf16>, vector<128x128xbf16>, vector<128x128xf32> -> vector<128x128xf32>
    %c0_17 = arith.constant 0 : index
    %c0_18 = arith.constant 0 : index
    %26 = vector.load %arg4[%c0_17, %c0_18] : memref<128x128xbf16, #tpu.memory_space<vmem>>, vector<128x128xbf16>
    %cst_19 = arith.constant dense<0.000000e+00> : vector<128x128xf32>
    %27 = tpu.matmul %23, %26, %cst_19 {dimension_numbers = #tpu.dot_dimension_numbers<[1], [0], [0], [1], [0, 0, 1, 1], [], []>} : vector<128x128xbf16>, vector<128x128xbf16>, vector<128x128xf32> -> vector<128x128xf32>
    %28 = arith.mulf %25, %25 : vector<128x128xf32>
    %29 = arith.mulf %27, %27 : vector<128x128xf32>
    %30 = arith.addf %28, %29 : vector<128x128xf32>
    %31 = math.sqrt %30 : vector<128x128xf32>
    %32 = vector.extract_strided_slice %31 {offsets = [0, 0], sizes = [64, 128], strides = [1, 1]} : vector<128x128xf32> to vector<64x128xf32>
    %33 = vector.extract_strided_slice %31 {offsets = [64, 0], sizes = [64, 128], strides = [1, 1]} : vector<128x128xf32> to vector<64x128xf32>
    %34 = arith.subf %32, %33 : vector<64x128xf32>
    %35 = arith.mulf %34, %34 : vector<64x128xf32>
    %36 = vector.shape_cast %35 : vector<64x128xf32> to vector<1x64x128xf32>
    %cst_20 = arith.constant dense<0.000000e+00> : vector<1xf32>
    %37 = vector.multi_reduction <add>, %36, %cst_20 [1, 2] : vector<1x64x128xf32> to vector<1xf32>
    %38 = vector.shape_cast %37 : vector<1xf32> to vector<1x1x1xf32>
    %39 = vector.extract %38[0, 0, 0] : f32 from vector<1x1x1xf32>
    %40 = vector.broadcast %39 : f32 to vector<1x1xf32>
    %41 = math.sqrt %8 : vector<1x1xf32>
    %cst_21 = arith.constant 0.00180421956 : f32
    %42 = vector.broadcast %cst_21 : f32 to vector<1x1xf32>
    %43 = arith.mulf %42, %41 : vector<1x1xf32>
    %44 = math.sqrt %40 : vector<1x1xf32>
    %cst_22 = arith.constant 2.92968762E-4 : f32
    %45 = vector.broadcast %cst_22 : f32 to vector<1x1xf32>
    %46 = arith.mulf %45, %44 : vector<1x1xf32>
    %47 = arith.addf %43, %46 : vector<1x1xf32>
    %c0_23 = arith.constant 0 : index
    %c0_24 = arith.constant 0 : index
    %48 = vector.load %arg5[%c0_23, %c0_24] : memref<1x1xf32, #tpu.memory_space<vmem>>, vector<1x1xf32>
    tpu.vector_store %arg5[%c0_23, %c0_24], %47 {strides = array<i32>} : memref<1x1xf32, #tpu.memory_space<vmem>>, vector<1x1xf32>,
    return
  }
}

</mosaic_0001>

<llo_original>
// kernel: run.1
$region0: #{run.1}
  #allocation0 [shape = 'u32[]', space=smem, size = 0x4, offset = 0x4, fixed_abs, tag = 'smem constant byte address 0x4 - core index']
  #allocation1 [shape = 'u32[72,128]{1,0:T(1,128)}', space=vmem, size = 0x9000, scoped, tag = 'internal scratch']
  #allocation2 [shape = 'f32[64,256]{1,0:T(8,128)}', space=vmem, size = 0x10000, scoped, tag = 'scratch operand']
  %s0 = inlined_call_operand.vmem [shape: f32[64,48], index: 0, kind: input, shape index: {}]
  %s1 = inlined_call_operand.vmem [shape: f32[64,48], index: 1, kind: input, shape index: {}]
  %s2 = inlined_call_operand.vmem [shape: bf16[128,64], index: 2, kind: input, shape index: {}]
  %s3 = inlined_call_operand.vmem [shape: bf16[128,128], index: 3, kind: input, shape index: {}]
  %s4 = inlined_call_operand.vmem [shape: bf16[128,128], index: 4, kind: input, shape index: {}]
  %s5 = inlined_call_operand.hbm [shape: f32[1,1], index: 5, kind: output, shape index: {}]
  %s6 = sld [smem:[#allocation0]]
  $region30: #{run.1} parent=0
    _
  %s8 = ssub.s32 1, %s6
  %s9 = scalar_select 0, %s8, %s6
  $region1: #{run.1} parent=0
    #allocation3 [shape = 'u8[512]{0}', space=vmem, size = 0x400, scoped, tag = 'output window, operand 0, single buffered']
    #allocation4 [shape = 's32[1]{0}', space=sflag, size = 0x4, scoped, tag = 'scoped memory for run.1']
    %10 = vsyncpa [#allocation4], 0
    // Predicated region
    $region2: #{run.1} parent=1 // pred_check
      _
    $region3: #{run.1} parent=1 // pred_check_branch
      %12 = sbr.rel (0) target = $region5
    $region4: #{run.1} parent=1 // pred_region
      _
    $region5: #{run.1} parent=1 // pred_fallthru
      _
    // Predicated region
    $region6: #{run.1} parent=1 // pred_check
      _
    $region7: #{run.1} parent=1 // pred_check_branch
      %14 = sbr.rel (0) target = $region9
    $region8: #{run.1} parent=1 // pred_region
      _
    $region9: #{run.1} parent=1 // pred_fallthru
      _
    // Predicated region
    $region10: #{run.1} parent=1 // pred_check
      _
    $region11: #{run.1} parent=1 // pred_check_branch
      %16 = sbr.rel (0) target = $region13
    $region12: #{run.1} parent=1 // pred_region
      _
    $region13: #{run.1} parent=1 // pred_fallthru
      _
    // Predicated region
    $region14: #{run.1} parent=1 // pred_check
      _
    $region15: #{run.1} parent=1 // pred_check_branch
      %18 = sbr.rel (0) target = $region17
    $region16: #{run.1} parent=1 // pred_region
      _
    $region17: #{run.1} parent=1 // pred_fallthru
      _
    // Predicated region
    $region18: #{run.1} parent=1 // pred_check
      _
    $region19: #{run.1} parent=1 // pred_check_branch
      %20 = sbr.rel (0) target = $region21
    $region20: #{run.1} parent=1 // pred_region
      _
    $region21: #{run.1} parent=1 // pred_fallthru
      _
    %v22 = vld [vmem:[%s0] sm:$0xff]
    %v23 = vld [vmem:[%s0 + $0x8] sm:$0xff]
    %v24 = vld [vmem:[%s0 + $0x10] sm:$0xff]
    %v25 = vld [vmem:[%s0 + $0x18] sm:$0xff]
    %v26 = vld [vmem:[%s0 + $0x20] sm:$0xff]
    %v27 = vld [vmem:[%s0 + $0x28] sm:$0xff]
    %v28 = vld [vmem:[%s0 + $0x30] sm:$0xff]
    %v29 = vld [vmem:[%s0 + $0x38] sm:$0xff]
    %v30 = vld [vmem:[%s1] sm:$0xff]
    %v31 = vld [vmem:[%s1 + $0x8] sm:$0xff]
    %v32 = vld [vmem:[%s1 + $0x10] sm:$0xff]
    %v33 = vld [vmem:[%s1 + $0x18] sm:$0xff]
    %v34 = vld [vmem:[%s1 + $0x20] sm:$0xff]
    %v35 = vld [vmem:[%s1 + $0x28] sm:$0xff]
    %v36 = vld [vmem:[%s1 + $0x30] sm:$0xff]
    %v37 = vld [vmem:[%s1 + $0x38] sm:$0xff]
    %v38 = vsub.f32 %v22, %v30
    %v39 = vsub.f32 %v23, %v31
    %v40 = vsub.f32 %v24, %v32
    %v41 = vsub.f32 %v25, %v33
    %v42 = vsub.f32 %v26, %v34
    %v43 = vsub.f32 %v27, %v35
    %v44 = vsub.f32 %v28, %v36
    %v45 = vsub.f32 %v29, %v37
    %v46 = vmul.f32 %v38, %v38
    %v47 = vmul.f32 %v39, %v39
    %v48 = vmul.f32 %v40, %v40
    %v49 = vmul.f32 %v41, %v41
    %v50 = vmul.f32 %v42, %v42
    %v51 = vmul.f32 %v43, %v43
    %v52 = vmul.f32 %v44, %v44
    %v53 = vmul.f32 %v45, %v45
    %vm54 = vcmask 392192
    %v55 = vsel %vm54, %v46, 0.0
    %v56 = vsel %vm54, %v47, 0.0
    %v57 = vadd.f32 %v55, %v56
    %v58 = vsel %vm54, %v48, 0.0
    %v59 = vadd.f32 %v57, %v58
    %v60 = vsel %vm54, %v49, 0.0
    %v61 = vadd.f32 %v59, %v60
    %v62 = vsel %vm54, %v50, 0.0
    %v63 = vadd.f32 %v61, %v62
    %v64 = vsel %vm54, %v51, 0.0
    %v65 = vadd.f32 %v63, %v64
    %v66 = vsel %vm54, %v52, 0.0
    %v67 = vadd.f32 %v65, %v66
    %v68 = vsel %vm54, %v53, 0.0
    %v69 = vadd.f32 %v67, %v68
    %70 = vadd.xlane.f32.xlu0 %v69
    %v71 = vpop.xlane.xlu0 %70
    %v72 = vrot.slane %v71, 4
    %v73 = vadd.f32 %v71, %v72
    %v74 = vrot.slane %v73, 2
    %v75 = vadd.f32 %v73, %v74
    %v76 = vrot.slane %v75, 1
    %v77 = vadd.f32 %v75, %v76
    %s78 = vtos %v77
    %v79 = vstv %s78
    %80 = vst [vmem:[#allocation2] sm:$0xff] 0.0
    %81 = vst [vmem:[#allocation2 + $0x8] sm:$0xff] 0.0
    %82 = vst [vmem:[#allocation2 + $0x10] sm:$0xff] 0.0
    %83 = vst [vmem:[#allocation2 + $0x18] sm:$0xff] 0.0
    %84 = vst [vmem:[#allocation2 + $0x20] sm:$0xff] 0.0
    %85 = vst [vmem:[#allocation2 + $0x28] sm:$0xff] 0.0
    %86 = vst [vmem:[#allocation2 + $0x30] sm:$0xff] 0.0
    %87 = vst [vmem:[#allocation2 + $0x38] sm:$0xff] 0.0
    %88 = vst [vmem:[#allocation2 + $0x40] sm:$0xff] 0.0
    %89 = vst [vmem:[#allocation2 + $0x48] sm:$0xff] 0.0
    %90 = vst [vmem:[#allocation2 + $0x50] sm:$0xff] 0.0
    %91 = vst [vmem:[#allocation2 + $0x58] sm:$0xff] 0.0
    %92 = vst [vmem:[#allocation2 + $0x60] sm:$0xff] 0.0
    %93 = vst [vmem:[#allocation2 + $0x68] sm:$0xff] 0.0
    %94 = vst [vmem:[#allocation2 + $0x70] sm:$0xff] 0.0
    %95 = vst [vmem:[#allocation2 + $0x78] sm:$0xff] 0.0
    %96 = vst.msk [vmem:[#allocation2] sm:$0xff] %vm54, %v22
    %97 = vst.msk [vmem:[#allocation2 + $0x10] sm:$0xff] %vm54, %v23
    %98 = vst.msk [vmem:[#allocation2 + $0x20] sm:$0xff] %vm54, %v24
    %99 = vst.msk [vmem:[#allocation2 + $0x30] sm:$0xff] %vm54, %v25
    %100 = vst.msk [vmem:[#allocation2 + $0x40] sm:$0xff] %vm54, %v26
    %101 = vst.msk [vmem:[#allocation2 + $0x50] sm:$0xff] %vm54, %v27
    %102 = vst.msk [vmem:[#allocation2 + $0x60] sm:$0xff] %vm54, %v28
    %103 = vst.msk [vmem:[#allocation2 + $0x70] sm:$0xff] %vm54, %v29
    %104 = vst.msk [vmem:[#allocation2 + $0x8] sm:$0xff] %vm54, %v30
    %105 = vst.msk [vmem:[#allocation2 + $0x18] sm:$0xff] %vm54, %v31
    %106 = vst.msk [vmem:[#allocation2 + $0x28] sm:$0xff] %vm54, %v32
    %107 = vst.msk [vmem:[#allocation2 + $0x38] sm:$0xff] %vm54, %v33
    %108 = vst.msk [vmem:[#allocation2 + $0x48] sm:$0xff] %vm54, %v34
    %109 = vst.msk [vmem:[#allocation2 + $0x58] sm:$0xff] %vm54, %v35
    %110 = vst.msk [vmem:[#allocation2 + $0x68] sm:$0xff] %vm54, %v36
    %111 = vst.msk [vmem:[#allocation2 + $0x78] sm:$0xff] %vm54, %v37
    %v112 = vld [vmem:[#allocation2] sm:$0xff]
    %v113 = vld [vmem:[#allocation2 + $0x8] sm:$0xff]
    %v114 = vld [vmem:[#allocation2 + $0x10] sm:$0xff]
    %v115 = vld [vmem:[#allocation2 + $0x18] sm:$0xff]
    %v116 = vld [vmem:[#allocation2 + $0x20] sm:$0xff]
    %v117 = vld [vmem:[#allocation2 + $0x28] sm:$0xff]
    %v118 = vld [vmem:[#allocation2 + $0x30] sm:$0xff]
    %v119 = vld [vmem:[#allocation2 + $0x38] sm:$0xff]
    %v120 = vld [vmem:[#allocation2 + $0x40] sm:$0xff]
    %v121 = vld [vmem:[#allocation2 + $0x48] sm:$0xff]
    %v122 = vld [vmem:[#allocation2 + $0x50] sm:$0xff]
    %v123 = vld [vmem:[#allocation2 + $0x58] sm:$0xff]
    %v124 = vld [vmem:[#allocation2 + $0x60] sm:$0xff]
    %v125 = vld [vmem:[#allocation2 + $0x68] sm:$0xff]
    %v126 = vld [vmem:[#allocation2 + $0x70] sm:$0xff]
    %v127 = vld [vmem:[#allocation2 + $0x78] sm:$0xff]
    %v128 = vpack.c.bf16 %v114, %v112
    %v129 = vpack.c.bf16 %v115, %v113
    %v130 = vpack.c.bf16 %v118, %v116
    %v131 = vpack.c.bf16 %v119, %v117
    %v132 = vpack.c.bf16 %v122, %v120
    %v133 = vpack.c.bf16 %v123, %v121
    %v134 = vpack.c.bf16 %v126, %v124
    %v135 = vpack.c.bf16 %v127, %v125
    %v136 = vld [vmem:[%s2] sm:$0xf]
    %v137 = vld [vmem:[%s2 + $0x4] sm:$0xf]
    %v138 = vld [vmem:[%s2 + $0x8] sm:$0xf]
    %v139 = vld [vmem:[%s2 + $0xc] sm:$0xf]
    %v140 = vld [vmem:[%s2 + $0x10] sm:$0xf]
    %v141 = vld [vmem:[%s2 + $0x14] sm:$0xf]
    %v142 = vld [vmem:[%s2 + $0x18] sm:$0xf]
    %v143 = vld [vmem:[%s2 + $0x1c] sm:$0xf]
    %v144 = vld [vmem:[%s2 + $0x20] sm:$0xf]
    %v145 = vld [vmem:[%s2 + $0x24] sm:$0xf]
    %v146 = vld [vmem:[%s2 + $0x28] sm:$0xf]
    %v147 = vld [vmem:[%s2 + $0x2c] sm:$0xf]
    %v148 = vld [vmem:[%s2 + $0x30] sm:$0xf]
    %v149 = vld [vmem:[%s2 + $0x34] sm:$0xf]
    %v150 = vld [vmem:[%s2 + $0x38] sm:$0xf]
    %v151 = vld [vmem:[%s2 + $0x3c] sm:$0xf]
    %v168 = vunpack.c.l.b16 %v136
    %v169 = vunpack.c.l.b16 %v137
    %v170 = vunpack.c.l.b16 %v138
    %v171 = vunpack.c.l.b16 %v139
    %v172 = vunpack.c.l.b16 %v140
    %v173 = vunpack.c.l.b16 %v141
    %v174 = vunpack.c.l.b16 %v142
    %v175 = vunpack.c.l.b16 %v143
    %v176 = vunpack.c.l.b16 %v144
    %v177 = vunpack.c.l.b16 %v145
    %v178 = vunpack.c.l.b16 %v146
    %v179 = vunpack.c.l.b16 %v147
    %v180 = vunpack.c.l.b16 %v148
    %v181 = vunpack.c.l.b16 %v149
    %v182 = vunpack.c.l.b16 %v150
    %v183 = vunpack.c.l.b16 %v151
    %v184 = vpack.c.b16 %v169, %v168
    %v185 = vpack.c.b16 %v171, %v170
    %v186 = vpack.c.b16 %v173, %v172
    %v187 = vpack.c.b16 %v175, %v174
    %v188 = vpack.c.b16 %v177, %v176
    %v189 = vpack.c.b16 %v179, %v178
    %v190 = vpack.c.b16 %v181, %v180
    %v191 = vpack.c.b16 %v183, %v182
    %vm192 = vcmask 523264
    %v194 = vsel %vm192, %v184, 0
    %v197 = vsel %vm192, %v185, 0
    %v200 = vsel %vm192, %v186, 0
    %v203 = vsel %vm192, %v187, 0
    %v206 = vsel %vm192, %v188, 0
    %v209 = vsel %vm192, %v189, 0
    %v212 = vsel %vm192, %v190, 0
    %v215 = vsel %vm192, %v191, 0
    %217 = vmatpush.bf16.msra.mxu0 0
    %218 = vmatpush.bf16.msra.mxu0 0
    %219 = vmatpush.bf16.msra.mxu0 0
    %220 = vmatpush.bf16.msra.mxu0 0
    %221 = vmatpush.bf16.msra.mxu0 %v134
    %222 = vmatpush.bf16.msra.mxu0 %v132
    %223 = vmatpush.bf16.msra.mxu0 %v130
    %224 = vmatpush.bf16.msra.mxu0 %v128
    %225 = vmatmul.bf16.gmra.mxu0 %v194
    %v226 = vpop.f32.mrf.mxu0
    %v227 = vadd.f32 0.0, %v226
    %v228 = vpop.f32.mrf.mxu0
    %v229 = vadd.f32 0.0, %v228
    %230 = vmatmul.bf16.gmra.mxu0 %v197
    %v231 = vpop.f32.mrf.mxu0
    %v232 = vadd.f32 0.0, %v231
    %v233 = vpop.f32.mrf.mxu0
    %v234 = vadd.f32 0.0, %v233
    %235 = vmatmul.bf16.gmra.mxu0 %v200
    %v236 = vpop.f32.mrf.mxu0
    %v237 = vadd.f32 0.0, %v236
    %v238 = vpop.f32.mrf.mxu0
    %v239 = vadd.f32 0.0, %v238
    %240 = vmatmul.bf16.gmra.mxu0 %v203
    %v241 = vpop.f32.mrf.mxu0
    %v242 = vadd.f32 0.0, %v241
    %v243 = vpop.f32.mrf.mxu0
    %v244 = vadd.f32 0.0, %v243
    %245 = vmatmul.bf16.gmra.mxu0 %v206
    %v246 = vpop.f32.mrf.mxu0
    %v247 = vadd.f32 0.0, %v246
    %v248 = vpop.f32.mrf.mxu0
    %v249 = vadd.f32 0.0, %v248
    %250 = vmatmul.bf16.gmra.mxu0 %v209
    %v251 = vpop.f32.mrf.mxu0
    %v252 = vadd.f32 0.0, %v251
    %v253 = vpop.f32.mrf.mxu0
    %v254 = vadd.f32 0.0, %v253
    %255 = vmatmul.bf16.gmra.mxu0 %v212
    %v256 = vpop.f32.mrf.mxu0
    %v257 = vadd.f32 0.0, %v256
    %v258 = vpop.f32.mrf.mxu0
    %v259 = vadd.f32 0.0, %v258
    %260 = vmatmul.bf16.gmra.mxu0 %v215
    %v261 = vpop.f32.mrf.mxu0
    %v262 = vadd.f32 0.0, %v261
    %v263 = vpop.f32.mrf.mxu0
    %v264 = vadd.f32 0.0, %v263
    %265 = vdwg.mxu0
    %266 = vmatpush.bf16.msra.mxu0 0
    %267 = vmatpush.bf16.msra.mxu0 0
    %268 = vmatpush.bf16.msra.mxu0 0
    %269 = vmatpush.bf16.msra.mxu0 0
    %270 = vmatpush.bf16.msra.mxu0 %v135
    %271 = vmatpush.bf16.msra.mxu0 %v133
    %272 = vmatpush.bf16.msra.mxu0 %v131
    %273 = vmatpush.bf16.msra.mxu0 %v129
    %274 = vmatmul.bf16.gmra.mxu0 %v194
    %v275 = vpop.f32.mrf.mxu0
    %v276 = vadd.f32 0.0, %v275
    %v277 = vpop.f32.mrf.mxu0
    %v278 = vadd.f32 0.0, %v277
    %279 = vmatmul.bf16.gmra.mxu0 %v197
    %v280 = vpop.f32.mrf.mxu0
    %v281 = vadd.f32 0.0, %v280
    %v282 = vpop.f32.mrf.mxu0
    %v283 = vadd.f32 0.0, %v282
    %284 = vmatmul.bf16.gmra.mxu0 %v200
    %v285 = vpop.f32.mrf.mxu0
    %v286 = vadd.f32 0.0, %v285
    %v287 = vpop.f32.mrf.mxu0
    %v288 = vadd.f32 0.0, %v287
    %289 = vmatmul.bf16.gmra.mxu0 %v203
    %v290 = vpop.f32.mrf.mxu0
    %v291 = vadd.f32 0.0, %v290
    %v292 = vpop.f32.mrf.mxu0
    %v293 = vadd.f32 0.0, %v292
    %294 = vmatmul.bf16.gmra.mxu0 %v206
    %v295 = vpop.f32.mrf.mxu0
    %v296 = vadd.f32 0.0, %v295
    %v297 = vpop.f32.mrf.mxu0
    %v298 = vadd.f32 0.0, %v297
    %299 = vmatmul.bf16.gmra.mxu0 %v209
    %v300 = vpop.f32.mrf.mxu0
    %v301 = vadd.f32 0.0, %v300
    %v302 = vpop.f32.mrf.mxu0
    %v303 = vadd.f32 0.0, %v302
    %304 = vmatmul.bf16.gmra.mxu0 %v212
    %v305 = vpop.f32.mrf.mxu0
    %v306 = vadd.f32 0.0, %v305
    %v307 = vpop.f32.mrf.mxu0
    %v308 = vadd.f32 0.0, %v307
    %309 = vmatmul.bf16.gmra.mxu0 %v215
    %v310 = vpop.f32.mrf.mxu0
    %v311 = vadd.f32 0.0, %v310
    %v312 = vpop.f32.mrf.mxu0
    %v313 = vadd.f32 0.0, %v312
    %314 = vdwg.mxu0
    %v315 = vpack.c.bf16 %v276, %v227
    %v316 = vpack.c.bf16 %v278, %v229
    %v317 = vpack.c.bf16 %v281, %v232
    %v318 = vpack.c.bf16 %v283, %v234
    %v319 = vpack.c.bf16 %v286, %v237
    %v320 = vpack.c.bf16 %v288, %v239
    %v321 = vpack.c.bf16 %v291, %v242
    %v322 = vpack.c.bf16 %v293, %v244
    %v323 = vpack.c.bf16 %v296, %v247
    %v324 = vpack.c.bf16 %v298, %v249
    %v325 = vpack.c.bf16 %v301, %v252
    %v326 = vpack.c.bf16 %v303, %v254
    %v327 = vpack.c.bf16 %v306, %v257
    %v328 = vpack.c.bf16 %v308, %v259
    %v329 = vpack.c.bf16 %v311, %v262
    %v330 = vpack.c.bf16 %v313, %v264
    %v339 = vunpack.c.l.b16 %v315
    %v340 = vunpack.c.l.b16 %v316
    %v341 = vunpack.c.l.b16 %v317
    %v342 = vunpack.c.l.b16 %v318
    %v343 = vunpack.c.l.b16 %v319
    %v344 = vunpack.c.l.b16 %v320
    %v345 = vunpack.c.l.b16 %v321
    %v346 = vunpack.c.l.b16 %v322
    %v347 = vpack.c.b16 %v340, %v339
    %v348 = vpack.c.b16 %v342, %v341
    %v349 = vpack.c.b16 %v344, %v343
    %v350 = vpack.c.b16 %v346, %v345
    %v355 = vunpack.c.h.b16 %v315
    %v356 = vunpack.c.h.b16 %v316
    %v357 = vunpack.c.h.b16 %v317
    %v358 = vunpack.c.h.b16 %v318
    %v359 = vunpack.c.h.b16 %v319
    %v360 = vunpack.c.h.b16 %v320
    %v361 = vunpack.c.h.b16 %v321
    %v362 = vunpack.c.h.b16 %v322
    %v363 = vpack.c.b16 %v356, %v355
    %v364 = vpack.c.b16 %v358, %v357
    %v365 = vpack.c.b16 %v360, %v359
    %v366 = vpack.c.b16 %v362, %v361
    %v379 = vunpack.c.l.b16 %v323
    %v380 = vunpack.c.l.b16 %v324
    %v381 = vunpack.c.l.b16 %v325
    %v382 = vunpack.c.l.b16 %v326
    %v383 = vunpack.c.l.b16 %v327
    %v384 = vunpack.c.l.b16 %v328
    %v385 = vunpack.c.l.b16 %v329
    %v386 = vunpack.c.l.b16 %v330
    %v387 = vpack.c.b16 %v380, %v379
    %v388 = vpack.c.b16 %v382, %v381
    %v389 = vpack.c.b16 %v384, %v383
    %v390 = vpack.c.b16 %v386, %v385
    %v395 = vunpack.c.h.b16 %v323
    %v396 = vunpack.c.h.b16 %v324
    %v397 = vunpack.c.h.b16 %v325
    %v398 = vunpack.c.h.b16 %v326
    %v399 = vunpack.c.h.b16 %v327
    %v400 = vunpack.c.h.b16 %v328
    %v401 = vunpack.c.h.b16 %v329
    %v402 = vunpack.c.h.b16 %v330
    %v403 = vpack.c.b16 %v396, %v395
    %v404 = vpack.c.b16 %v398, %v397
    %v405 = vpack.c.b16 %v400, %v399
    %v406 = vpack.c.b16 %v402, %v401
    %v411 = vld [vmem:[%s3] sm:$0xf]
    %v412 = vld [vmem:[%s3 + $0x4] sm:$0xf]
    %v413 = vld [vmem:[%s3 + $0x8] sm:$0xf]
    %v414 = vld [vmem:[%s3 + $0xc] sm:$0xf]
    %v415 = vld [vmem:[%s3 + $0x10] sm:$0xf]
    %v416 = vld [vmem:[%s3 + $0x14] sm:$0xf]
    %v417 = vld [vmem:[%s3 + $0x18] sm:$0xf]
    %v418 = vld [vmem:[%s3 + $0x1c] sm:$0xf]
    %v419 = vld [vmem:[%s3 + $0x20] sm:$0xf]
    %v420 = vld [vmem:[%s3 + $0x24] sm:$0xf]
    %v421 = vld [vmem:[%s3 + $0x28] sm:$0xf]
    %v422 = vld [vmem:[%s3 + $0x2c] sm:$0xf]
    %v423 = vld [vmem:[%s3 + $0x30] sm:$0xf]
    %v424 = vld [vmem:[%s3 + $0x34] sm:$0xf]
    %v425 = vld [vmem:[%s3 + $0x38] sm:$0xf]
    %v426 = vld [vmem:[%s3 + $0x3c] sm:$0xf]
    %v443 = vunpack.c.l.b16 %v411
    %v444 = vunpack.c.l.b16 %v412
    %v445 = vunpack.c.l.b16 %v413
    %v446 = vunpack.c.l.b16 %v414
    %v447 = vunpack.c.l.b16 %v415
    %v448 = vunpack.c.l.b16 %v416
    %v449 = vunpack.c.l.b16 %v417
    %v450 = vunpack.c.l.b16 %v418
    %v451 = vunpack.c.l.b16 %v419
    %v452 = vunpack.c.l.b16 %v420
    %v453 = vunpack.c.l.b16 %v421
    %v454 = vunpack.c.l.b16 %v422
    %v455 = vunpack.c.l.b16 %v423
    %v456 = vunpack.c.l.b16 %v424
    %v457 = vunpack.c.l.b16 %v425
    %v458 = vunpack.c.l.b16 %v426
    %v459 = vpack.c.b16 %v444, %v443
    %v460 = vpack.c.b16 %v446, %v445
    %v461 = vpack.c.b16 %v448, %v447
    %v462 = vpack.c.b16 %v450, %v449
    %v463 = vpack.c.b16 %v452, %v451
    %v464 = vpack.c.b16 %v454, %v453
    %v465 = vpack.c.b16 %v456, %v455
    %v466 = vpack.c.b16 %v458, %v457
    %475 = vmatpush.bf16.msra.mxu0 %v466
    %476 = vmatpush.bf16.msra.mxu0 %v465
    %477 = vmatpush.bf16.msra.mxu0 %v464
    %478 = vmatpush.bf16.msra.mxu0 %v463
    %479 = vmatpush.bf16.msra.mxu0 %v462
    %480 = vmatpush.bf16.msra.mxu0 %v461
    %481 = vmatpush.bf16.msra.mxu0 %v460
    %482 = vmatpush.bf16.msra.mxu0 %v459
    %483 = vmatmul.bf16.gmra.mxu0 %v347
    %v484 = vpop.f32.mrf.mxu0
    %v485 = vadd.f32 0.0, %v484
    %v486 = vpop.f32.mrf.mxu0
    %v487 = vadd.f32 0.0, %v486
    %488 = vmatmul.bf16.gmra.mxu0 %v348
    %v489 = vpop.f32.mrf.mxu0
    %v490 = vadd.f32 0.0, %v489
    %v491 = vpop.f32.mrf.mxu0
    %v492 = vadd.f32 0.0, %v491
    %493 = vmatmul.bf16.gmra.mxu0 %v349
    %v494 = vpop.f32.mrf.mxu0
    %v495 = vadd.f32 0.0, %v494
    %v496 = vpop.f32.mrf.mxu0
    %v497 = vadd.f32 0.0, %v496
    %498 = vmatmul.bf16.gmra.mxu0 %v350
    %v499 = vpop.f32.mrf.mxu0
    %v500 = vadd.f32 0.0, %v499
    %v501 = vpop.f32.mrf.mxu0
    %v502 = vadd.f32 0.0, %v501
    %503 = vmatmul.bf16.gmra.mxu0 %v363
    %v504 = vpop.f32.mrf.mxu0
    %v505 = vadd.f32 0.0, %v504
    %v506 = vpop.f32.mrf.mxu0
    %v507 = vadd.f32 0.0, %v506
    %508 = vmatmul.bf16.gmra.mxu0 %v364
    %v509 = vpop.f32.mrf.mxu0
    %v510 = vadd.f32 0.0, %v509
    %v511 = vpop.f32.mrf.mxu0
    %v512 = vadd.f32 0.0, %v511
    %513 = vmatmul.bf16.gmra.mxu0 %v365
    %v514 = vpop.f32.mrf.mxu0
    %v515 = vadd.f32 0.0, %v514
    %v516 = vpop.f32.mrf.mxu0
    %v517 = vadd.f32 0.0, %v516
    %518 = vmatmul.bf16.gmra.mxu0 %v366
    %v519 = vpop.f32.mrf.mxu0
    %v520 = vadd.f32 0.0, %v519
    %v521 = vpop.f32.mrf.mxu0
    %v522 = vadd.f32 0.0, %v521
    %523 = vdwg.mxu0
    %v524 = vld [vmem:[%s4] sm:$0xf]
    %v525 = vld [vmem:[%s4 + $0x4] sm:$0xf]
    %v526 = vld [vmem:[%s4 + $0x8] sm:$0xf]
    %v527 = vld [vmem:[%s4 + $0xc] sm:$0xf]
    %v528 = vld [vmem:[%s4 + $0x10] sm:$0xf]
    %v529 = vld [vmem:[%s4 + $0x14] sm:$0xf]
    %v530 = vld [vmem:[%s4 + $0x18] sm:$0xf]
    %v531 = vld [vmem:[%s4 + $0x1c] sm:$0xf]
    %v532 = vld [vmem:[%s4 + $0x20] sm:$0xf]
    %v533 = vld [vmem:[%s4 + $0x24] sm:$0xf]
    %v534 = vld [vmem:[%s4 + $0x28] sm:$0xf]
    %v535 = vld [vmem:[%s4 + $0x2c] sm:$0xf]
    %v536 = vld [vmem:[%s4 + $0x30] sm:$0xf]
    %v537 = vld [vmem:[%s4 + $0x34] sm:$0xf]
    %v538 = vld [vmem:[%s4 + $0x38] sm:$0xf]
    %v539 = vld [vmem:[%s4 + $0x3c] sm:$0xf]
    %v556 = vunpack.c.l.b16 %v524
    %v557 = vunpack.c.l.b16 %v525
    %v558 = vunpack.c.l.b16 %v526
    %v559 = vunpack.c.l.b16 %v527
    %v560 = vunpack.c.l.b16 %v528
    %v561 = vunpack.c.l.b16 %v529
    %v562 = vunpack.c.l.b16 %v530
    %v563 = vunpack.c.l.b16 %v531
    %v564 = vunpack.c.l.b16 %v532
    %v565 = vunpack.c.l.b16 %v533
    %v566 = vunpack.c.l.b16 %v534
    %v567 = vunpack.c.l.b16 %v535
    %v568 = vunpack.c.l.b16 %v536
    %v569 = vunpack.c.l.b16 %v537
    %v570 = vunpack.c.l.b16 %v538
    %v571 = vunpack.c.l.b16 %v539
    %v572 = vpack.c.b16 %v557, %v556
    %v573 = vpack.c.b16 %v559, %v558
    %v574 = vpack.c.b16 %v561, %v560
    %v575 = vpack.c.b16 %v563, %v562
    %v576 = vpack.c.b16 %v565, %v564
    %v577 = vpack.c.b16 %v567, %v566
    %v578 = vpack.c.b16 %v569, %v568
    %v579 = vpack.c.b16 %v571, %v570
    %588 = vmatpush.bf16.msra.mxu0 %v579
    %589 = vmatpush.bf16.msra.mxu0 %v578
    %590 = vmatpush.bf16.msra.mxu0 %v577
    %591 = vmatpush.bf16.msra.mxu0 %v576
    %592 = vmatpush.bf16.msra.mxu0 %v575
    %593 = vmatpush.bf16.msra.mxu0 %v574
    %594 = vmatpush.bf16.msra.mxu0 %v573
    %595 = vmatpush.bf16.msra.mxu0 %v572
    %596 = vmatmul.bf16.gmra.mxu0 %v387
    %v597 = vpop.f32.mrf.mxu0
    %v598 = vadd.f32 0.0, %v597
    %v599 = vpop.f32.mrf.mxu0
    %v600 = vadd.f32 0.0, %v599
    %601 = vmatmul.bf16.gmra.mxu0 %v388
    %v602 = vpop.f32.mrf.mxu0
    %v603 = vadd.f32 0.0, %v602
    %v604 = vpop.f32.mrf.mxu0
    %v605 = vadd.f32 0.0, %v604
    %606 = vmatmul.bf16.gmra.mxu0 %v389
    %v607 = vpop.f32.mrf.mxu0
    %v608 = vadd.f32 0.0, %v607
    %v609 = vpop.f32.mrf.mxu0
    %v610 = vadd.f32 0.0, %v609
    %611 = vmatmul.bf16.gmra.mxu0 %v390
    %v612 = vpop.f32.mrf.mxu0
    %v613 = vadd.f32 0.0, %v612
    %v614 = vpop.f32.mrf.mxu0
    %v615 = vadd.f32 0.0, %v614
    %616 = vmatmul.bf16.gmra.mxu0 %v403
    %v617 = vpop.f32.mrf.mxu0
    %v618 = vadd.f32 0.0, %v617
    %v619 = vpop.f32.mrf.mxu0
    %v620 = vadd.f32 0.0, %v619
    %621 = vmatmul.bf16.gmra.mxu0 %v404
    %v622 = vpop.f32.mrf.mxu0
    %v623 = vadd.f32 0.0, %v622
    %v624 = vpop.f32.mrf.mxu0
    %v625 = vadd.f32 0.0, %v624
    %626 = vmatmul.bf16.gmra.mxu0 %v405
    %v627 = vpop.f32.mrf.mxu0
    %v628 = vadd.f32 0.0, %v627
    %v629 = vpop.f32.mrf.mxu0
    %v630 = vadd.f32 0.0, %v629
    %631 = vmatmul.bf16.gmra.mxu0 %v406
    %v632 = vpop.f32.mrf.mxu0
    %v633 = vadd.f32 0.0, %v632
    %v634 = vpop.f32.mrf.mxu0
    %v635 = vadd.f32 0.0, %v634
    %636 = vdwg.mxu0
    %v637 = vmul.f32 %v485, %v485
    %v638 = vmul.f32 %v487, %v487
    %v639 = vmul.f32 %v490, %v490
    %v640 = vmul.f32 %v492, %v492
    %v641 = vmul.f32 %v495, %v495
    %v642 = vmul.f32 %v497, %v497
    %v643 = vmul.f32 %v500, %v500
    %v644 = vmul.f32 %v502, %v502
    %v645 = vmul.f32 %v505, %v505
    %v646 = vmul.f32 %v507, %v507
    %v647 = vmul.f32 %v510, %v510
    %v648 = vmul.f32 %v512, %v512
    %v649 = vmul.f32 %v515, %v515
    %v650 = vmul.f32 %v517, %v517
    %v651 = vmul.f32 %v520, %v520
    %v652 = vmul.f32 %v522, %v522
    %v653 = vmul.f32 %v598, %v598
    %v654 = vmul.f32 %v600, %v600
    %v655 = vmul.f32 %v603, %v603
    %v656 = vmul.f32 %v605, %v605
    %v657 = vmul.f32 %v608, %v608
    %v658 = vmul.f32 %v610, %v610
    %v659 = vmul.f32 %v613, %v613
    %v660 = vmul.f32 %v615, %v615
    %v661 = vmul.f32 %v618, %v618
    %v662 = vmul.f32 %v620, %v620
    %v663 = vmul.f32 %v623, %v623
    %v664 = vmul.f32 %v625, %v625
    %v665 = vmul.f32 %v628, %v628
    %v666 = vmul.f32 %v630, %v630
    %v667 = vmul.f32 %v633, %v633
    %v668 = vmul.f32 %v635, %v635
    %v669 = vadd.f32 %v637, %v653
    %v670 = vadd.f32 %v638, %v654
    %v671 = vadd.f32 %v639, %v655
    %v672 = vadd.f32 %v640, %v656
    %v673 = vadd.f32 %v641, %v657
    %v674 = vadd.f32 %v642, %v658
    %v675 = vadd.f32 %v643, %v659
    %v676 = vadd.f32 %v644, %v660
    %v677 = vadd.f32 %v645, %v661
    %v678 = vadd.f32 %v646, %v662
    %v679 = vadd.f32 %v647, %v663
    %v680 = vadd.f32 %v648, %v664
    %v681 = vadd.f32 %v649, %v665
    %v682 = vadd.f32 %v650, %v666
    %v683 = vadd.f32 %v651, %v667
    %v684 = vadd.f32 %v652, %v668
    %v685 = vrsqrt.pop %v669
    %v686 = vmul.f32 %v685, %v669
    %v687 = vmul.f32 %v686, %v685
    %v688 = vmul.f32 0.5, %v687
    %v689 = vsub.f32 1.5, %v688
    %v690 = vmul.f32 %v685, %v689
    %v691 = vmul.f32 %v669, %v690
    %vm692 = vcmp.eq.f32.partialorder %v669, inf
    %v693 = vsel %vm692, %v669, %v691
    %vm694 = vcmp.eq.f32.partialorder %v669, 0.0
    %v695 = vand.u32 %v669, 2147483648
    %v696 = vsel %vm694, %v695, %v693
    %v697 = vrsqrt.pop %v670
    %v698 = vmul.f32 %v697, %v670
    %v699 = vmul.f32 %v698, %v697
    %v700 = vmul.f32 0.5, %v699
    %v701 = vsub.f32 1.5, %v700
    %v702 = vmul.f32 %v697, %v701
    %v703 = vmul.f32 %v670, %v702
    %vm704 = vcmp.eq.f32.partialorder %v670, inf
    %v705 = vsel %vm704, %v670, %v703
    %vm706 = vcmp.eq.f32.partialorder %v670, 0.0
    %v707 = vand.u32 %v670, 2147483648
    %v708 = vsel %vm706, %v707, %v705
    %v709 = vrsqrt.pop %v671
    %v710 = vmul.f32 %v709, %v671
    %v711 = vmul.f32 %v710, %v709
    %v712 = vmul.f32 0.5, %v711
    %v713 = vsub.f32 1.5, %v712
    %v714 = vmul.f32 %v709, %v713
    %v715 = vmul.f32 %v671, %v714
    %vm716 = vcmp.eq.f32.partialorder %v671, inf
    %v717 = vsel %vm716, %v671, %v715
    %vm718 = vcmp.eq.f32.partialorder %v671, 0.0
    %v719 = vand.u32 %v671, 2147483648
    %v720 = vsel %vm718, %v719, %v717
    %v721 = vrsqrt.pop %v672
    %v722 = vmul.f32 %v721, %v672
    %v723 = vmul.f32 %v722, %v721
    %v724 = vmul.f32 0.5, %v723
    %v725 = vsub.f32 1.5, %v724
    %v726 = vmul.f32 %v721, %v725
    %v727 = vmul.f32 %v672, %v726
    %vm728 = vcmp.eq.f32.partialorder %v672, inf
    %v729 = vsel %vm728, %v672, %v727
    %vm730 = vcmp.eq.f32.partialorder %v672, 0.0
    %v731 = vand.u32 %v672, 2147483648
    %v732 = vsel %vm730, %v731, %v729
    %v733 = vrsqrt.pop %v673
    %v734 = vmul.f32 %v733, %v673
    %v735 = vmul.f32 %v734, %v733
    %v736 = vmul.f32 0.5, %v735
    %v737 = vsub.f32 1.5, %v736
    %v738 = vmul.f32 %v733, %v737
    %v739 = vmul.f32 %v673, %v738
    %vm740 = vcmp.eq.f32.partialorder %v673, inf
    %v741 = vsel %vm740, %v673, %v739
    %vm742 = vcmp.eq.f32.partialorder %v673, 0.0
    %v743 = vand.u32 %v673, 2147483648
    %v744 = vsel %vm742, %v743, %v741
    %v745 = vrsqrt.pop %v674
    %v746 = vmul.f32 %v745, %v674
    %v747 = vmul.f32 %v746, %v745
    %v748 = vmul.f32 0.5, %v747
    %v749 = vsub.f32 1.5, %v748
    %v750 = vmul.f32 %v745, %v749
    %v751 = vmul.f32 %v674, %v750
    %vm752 = vcmp.eq.f32.partialorder %v674, inf
    %v753 = vsel %vm752, %v674, %v751
    %vm754 = vcmp.eq.f32.partialorder %v674, 0.0
    %v755 = vand.u32 %v674, 2147483648
    %v756 = vsel %vm754, %v755, %v753
    %v757 = vrsqrt.pop %v675
    %v758 = vmul.f32 %v757, %v675
    %v759 = vmul.f32 %v758, %v757
    %v760 = vmul.f32 0.5, %v759
    %v761 = vsub.f32 1.5, %v760
    %v762 = vmul.f32 %v757, %v761
    %v763 = vmul.f32 %v675, %v762
    %vm764 = vcmp.eq.f32.partialorder %v675, inf
    %v765 = vsel %vm764, %v675, %v763
    %vm766 = vcmp.eq.f32.partialorder %v675, 0.0
    %v767 = vand.u32 %v675, 2147483648
    %v768 = vsel %vm766, %v767, %v765
    %v769 = vrsqrt.pop %v676
    %v770 = vmul.f32 %v769, %v676
    %v771 = vmul.f32 %v770, %v769
    %v772 = vmul.f32 0.5, %v771
    %v773 = vsub.f32 1.5, %v772
    %v774 = vmul.f32 %v769, %v773
    %v775 = vmul.f32 %v676, %v774
    %vm776 = vcmp.eq.f32.partialorder %v676, inf
    %v777 = vsel %vm776, %v676, %v775
    %vm778 = vcmp.eq.f32.partialorder %v676, 0.0
    %v779 = vand.u32 %v676, 2147483648
    %v780 = vsel %vm778, %v779, %v777
    %v781 = vrsqrt.pop %v677
    %v782 = vmul.f32 %v781, %v677
    %v783 = vmul.f32 %v782, %v781
    %v784 = vmul.f32 0.5, %v783
    %v785 = vsub.f32 1.5, %v784
    %v786 = vmul.f32 %v781, %v785
    %v787 = vmul.f32 %v677, %v786
    %vm788 = vcmp.eq.f32.partialorder %v677, inf
    %v789 = vsel %vm788, %v677, %v787
    %vm790 = vcmp.eq.f32.partialorder %v677, 0.0
    %v791 = vand.u32 %v677, 2147483648
    %v792 = vsel %vm790, %v791, %v789
    %v793 = vrsqrt.pop %v678
    %v794 = vmul.f32 %v793, %v678
    %v795 = vmul.f32 %v794, %v793
    %v796 = vmul.f32 0.5, %v795
    %v797 = vsub.f32 1.5, %v796
    %v798 = vmul.f32 %v793, %v797
    %v799 = vmul.f32 %v678, %v798
    %vm800 = vcmp.eq.f32.partialorder %v678, inf
    %v801 = vsel %vm800, %v678, %v799
    %vm802 = vcmp.eq.f32.partialorder %v678, 0.0
    %v803 = vand.u32 %v678, 2147483648
    %v804 = vsel %vm802, %v803, %v801
    %v805 = vrsqrt.pop %v679
    %v806 = vmul.f32 %v805, %v679
    %v807 = vmul.f32 %v806, %v805
    %v808 = vmul.f32 0.5, %v807
    %v809 = vsub.f32 1.5, %v808
    %v810 = vmul.f32 %v805, %v809
    %v811 = vmul.f32 %v679, %v810
    %vm812 = vcmp.eq.f32.partialorder %v679, inf
    %v813 = vsel %vm812, %v679, %v811
    %vm814 = vcmp.eq.f32.partialorder %v679, 0.0
    %v815 = vand.u32 %v679, 2147483648
    %v816 = vsel %vm814, %v815, %v813
    %v817 = vrsqrt.pop %v680
    %v818 = vmul.f32 %v817, %v680
    %v819 = vmul.f32 %v818, %v817
    %v820 = vmul.f32 0.5, %v819
    %v821 = vsub.f32 1.5, %v820
    %v822 = vmul.f32 %v817, %v821
    %v823 = vmul.f32 %v680, %v822
    %vm824 = vcmp.eq.f32.partialorder %v680, inf
    %v825 = vsel %vm824, %v680, %v823
    %vm826 = vcmp.eq.f32.partialorder %v680, 0.0
    %v827 = vand.u32 %v680, 2147483648
    %v828 = vsel %vm826, %v827, %v825
    %v829 = vrsqrt.pop %v681
    %v830 = vmul.f32 %v829, %v681
    %v831 = vmul.f32 %v830, %v829
    %v832 = vmul.f32 0.5, %v831
    %v833 = vsub.f32 1.5, %v832
    %v834 = vmul.f32 %v829, %v833
    %v835 = vmul.f32 %v681, %v834
    %vm836 = vcmp.eq.f32.partialorder %v681, inf
    %v837 = vsel %vm836, %v681, %v835
    %vm838 = vcmp.eq.f32.partialorder %v681, 0.0
    %v839 = vand.u32 %v681, 2147483648
    %v840 = vsel %vm838, %v839, %v837
    %v841 = vrsqrt.pop %v682
    %v842 = vmul.f32 %v841, %v682
    %v843 = vmul.f32 %v842, %v841
    %v844 = vmul.f32 0.5, %v843
    %v845 = vsub.f32 1.5, %v844
    %v846 = vmul.f32 %v841, %v845
    %v847 = vmul.f32 %v682, %v846
    %vm848 = vcmp.eq.f32.partialorder %v682, inf
    %v849 = vsel %vm848, %v682, %v847
    %vm850 = vcmp.eq.f32.partialorder %v682, 0.0
    %v851 = vand.u32 %v682, 2147483648
    %v852 = vsel %vm850, %v851, %v849
    %v853 = vrsqrt.pop %v683
    %v854 = vmul.f32 %v853, %v683
    %v855 = vmul.f32 %v854, %v853
    %v856 = vmul.f32 0.5, %v855
    %v857 = vsub.f32 1.5, %v856
    %v858 = vmul.f32 %v853, %v857
    %v859 = vmul.f32 %v683, %v858
    %vm860 = vcmp.eq.f32.partialorder %v683, inf
    %v861 = vsel %vm860, %v683, %v859
    %vm862 = vcmp.eq.f32.partialorder %v683, 0.0
    %v863 = vand.u32 %v683, 2147483648
    %v864 = vsel %vm862, %v863, %v861
    %v865 = vrsqrt.pop %v684
    %v866 = vmul.f32 %v865, %v684
    %v867 = vmul.f32 %v866, %v865
    %v868 = vmul.f32 0.5, %v867
    %v869 = vsub.f32 1.5, %v868
    %v870 = vmul.f32 %v865, %v869
    %v871 = vmul.f32 %v684, %v870
    %vm872 = vcmp.eq.f32.partialorder %v684, inf
    %v873 = vsel %vm872, %v684, %v871
    %vm874 = vcmp.eq.f32.partialorder %v684, 0.0
    %v875 = vand.u32 %v684, 2147483648
    %v876 = vsel %vm874, %v875, %v873
    %v877 = vsub.f32 %v696, %v792
    %v878 = vsub.f32 %v708, %v804
    %v879 = vsub.f32 %v720, %v816
    %v880 = vsub.f32 %v732, %v828
    %v881 = vsub.f32 %v744, %v840
    %v882 = vsub.f32 %v756, %v852
    %v883 = vsub.f32 %v768, %v864
    %v884 = vsub.f32 %v780, %v876
    %v885 = vmul.f32 %v877, %v877
    %v886 = vmul.f32 %v878, %v878
    %v887 = vmul.f32 %v879, %v879
    %v888 = vmul.f32 %v880, %v880
    %v889 = vmul.f32 %v881, %v881
    %v890 = vmul.f32 %v882, %v882
    %v891 = vmul.f32 %v883, %v883
    %v892 = vmul.f32 %v884, %v884
    %v893 = vadd.f32 %v885, %v886
    %v894 = vadd.f32 %v893, %v887
    %v895 = vadd.f32 %v894, %v888
    %v896 = vadd.f32 %v895, %v889
    %v897 = vadd.f32 %v896, %v890
    %v898 = vadd.f32 %v897, %v891
    %v899 = vadd.f32 %v898, %v892
    %900 = vadd.xlane.f32.xlu0 %v899
    %v901 = vpop.xlane.xlu0 %900
    %v902 = vrot.slane %v901, 4
    %v903 = vadd.f32 %v901, %v902
    %v904 = vrot.slane %v903, 2
    %v905 = vadd.f32 %v903, %v904
    %v906 = vrot.slane %v905, 1
    %v907 = vadd.f32 %v905, %v906
    %s908 = vtos %v907
    %v909 = vstv %s908
    %v910 = vrsqrt.pop %v79
    %v911 = vmul.f32 %v910, %v79
    %v912 = vmul.f32 %v911, %v910
    %v913 = vmul.f32 0.5, %v912
    %v914 = vsub.f32 1.5, %v913
    %v915 = vmul.f32 %v910, %v914
    %v916 = vmul.f32 %v79, %v915
    %vm917 = vcmp.eq.f32.partialorder %v79, inf
    %v918 = vsel %vm917, %v79, %v916
    %vm919 = vcmp.eq.f32.partialorder %v79, 0.0
    %v920 = vand.u32 %v79, 2147483648
    %v921 = vsel %vm919, %v920, %v918
    %v922 = vmul.f32 %v921, 0.0018042196
    %v923 = vrsqrt.pop %v909
    %v924 = vmul.f32 %v923, %v909
    %v925 = vmul.f32 %v924, %v923
    %v926 = vmul.f32 0.5, %v925
    %v927 = vsub.f32 1.5, %v926
    %v928 = vmul.f32 %v923, %v927
    %v929 = vmul.f32 %v909, %v928
    %vm930 = vcmp.eq.f32.partialorder %v909, inf
    %v931 = vsel %vm930, %v909, %v929
    %vm932 = vcmp.eq.f32.partialorder %v909, 0.0
    %v933 = vand.u32 %v909, 2147483648
    %v934 = vsel %vm932, %v933, %v931
    %v935 = vmul.f32 %v934, 0.00029296876
    %v936 = vadd.f32 %v922, %v935
    %vm937 = vcmask 0
    %938 = vst.msk [vmem:[#allocation3] sm:$0x1] %vm937, %v936
    // Predicated region
    $region22: #{run.1} parent=1 // pred_check
      _
    $region23: #{run.1} parent=1 // pred_check_branch
      %940 = sbr.rel (0) target = $region25
    $region24: #{run.1} parent=1 // pred_region
      %942 = vsyncadd [#allocation4], 0
      %s944 = sshll.u32 [#allocation3], 4
      %s945 = int_to_ptr.vmem [resolvable:$true] %s944
      %s946 = sshll.u32 %s5, 4
      %s947 = int_to_ptr.hbm [resolvable:$true] %s946
      %949 = dma.vmem_to_hbm [thread:$0]  %s945, 16, %s947, [#allocation4]
    $region25: #{run.1} parent=1 // pred_fallthru
      _
    // Predicated region
    $region26: #{run.1} parent=1 // pred_check
      _
    $region27: #{run.1} parent=1 // pred_check_branch
      %951 = sbr.rel (0) target = $region29
    $region28: #{run.1} parent=1 // pred_region
      %953 = dma.done [#allocation4], 16
    $region29: #{run.1} parent=1 // pred_fallthru
      _
    %954 = vsyncpa [#allocation4], 1

</llo_original>
